<compile_context>
chip_gen: v6e
topology: v6e:2x2x1
jax: 0.10.0
libtpu: 0.0.40
codegen_flags: <defaults>
</compile_context>

<pallas_src>
import functools
import math

import jax
import jax.numpy as jnp
from jax.experimental import pallas as pl
from jax.experimental.pallas import tpu as pltpu


# All-inclusive per-grid-step VMEM budget for one tile: 2x input + 2x output
# double buffers (dtype-sized) plus ~4 tile-sized f32 temporaries from the kernel
# body (x_f32, x-u, y, slack).  16 MiB keeps the kernel well inside v7x's 64 MiB
# physical / 32 MiB default-scoped VMEM; 512+-row tiles already sit at ~85% of the
# HBM roofline, so the smaller budget costs nothing on v5e/v6e either.
_TILE_BUDGET = 16 * 1024 * 1024
# Explicit scoped-VMEM limit: needed on v5e (default ~16 MiB), safe on v7x (64 MiB).
_VMEM_LIMIT_BYTES = 48 * 1024 * 1024
# Aim for at least this many grid steps so the pipeline has overlap and both
# TensorCores get work on v7x.
_MIN_GRID_STEPS = 8


def _round_up(v, m):
    return (v + m - 1) // m * m


def _cdiv(a, b):
    return -(-a // b)


# ----------------------------------------------------------------------------
# Pallas kernels
# ----------------------------------------------------------------------------
def _ln_rows_kernel(x_ref, g_ref, b_ref, o_ref, *, eps):
    """channels_last: normalize each row over the lane (channel) axis."""
    x = x_ref[...].astype(jnp.float32)                     # (tn, C)
    u = jnp.mean(x, axis=-1, keepdims=True)
    d = x - u
    s = jnp.mean(d * d, axis=-1, keepdims=True)
    y = d * jax.lax.rsqrt(s + eps)
    y = y * g_ref[...].astype(jnp.float32) + b_ref[...].astype(jnp.float32)  # (1, C) bcast
    o_ref[...] = y.astype(o_ref.dtype)


def _ln_cfirst_kernel(x_ref, g_ref, b_ref, o_ref, *, eps):
    """channels_first: normalize each spatial column over the sublane (channel) axis.

    Tile layout is (bt, C, ts): channels on sublanes, spatial on lanes.  The
    cross-sublane reduction runs on the XLU; stores stay lane-dense and no
    transpose of the activation is ever needed.
    """
    x = x_ref[...].astype(jnp.float32)                     # (bt, C, ts)
    u = jnp.mean(x, axis=1, keepdims=True)                 # (bt, 1, ts)
    d = x - u
    s = jnp.mean(d * d, axis=1, keepdims=True)
    y = d * jax.lax.rsqrt(s + eps)
    y = y * g_ref[...].astype(jnp.float32) + b_ref[...].astype(jnp.float32)  # (C, 1) bcast
    o_ref[...] = y.astype(o_ref.dtype)


# ----------------------------------------------------------------------------
# Wrappers
# ----------------------------------------------------------------------------
def layernorm_channels_last(x, weight, bias, eps=1e-6):
    """F.layer_norm over the last axis. x: [..., C], weight/bias: [C]."""
    shp = x.shape
    C = shp[-1]
    x2 = x.reshape(-1, C)
    N = x2.shape[0]

    itemsize = jnp.dtype(x.dtype).itemsize
    Cp = _round_up(C, 128)                         # lane padding inside VMEM
    per_row_bytes = Cp * (4 * itemsize + 16)       # 2x in + 2x out dbuf + f32 temps
    tn_budget = max(8, (_TILE_BUDGET // per_row_bytes) // 8 * 8)
    tn_steps = _round_up(_cdiv(N, _MIN_GRID_STEPS), 8)   # aim for >= ~8 grid steps
    tn = max(8, min(tn_budget, tn_steps))
    if tn >= N:
        tn = N                                      # single full-extent block
    else:
        # Rebalance tile from step count; ragged tail is handled by Pallas
        # masking (no jnp.pad / slice HBM round trips), waste < 8 rows/step.
        n_steps = _cdiv(N, tn)
        tn = _round_up(_cdiv(N, n_steps), 8)

    out = pl.pallas_call(
        functools.partial(_ln_rows_kernel, eps=eps),
        out_shape=jax.ShapeDtypeStruct((N, C), x.dtype),
        grid=(_cdiv(N, tn),),
        in_specs=[
            pl.BlockSpec((tn, C), lambda i: (i, 0)),
            pl.BlockSpec((1, C), lambda i: (0, 0)),
            pl.BlockSpec((1, C), lambda i: (0, 0)),
        ],
        out_specs=pl.BlockSpec((tn, C), lambda i: (i, 0)),
        compiler_params=pltpu.CompilerParams(
            dimension_semantics=("parallel",),
            vmem_limit_bytes=_VMEM_LIMIT_BYTES,
        ),
    )(x2, weight.reshape(1, C), bias.reshape(1, C))
    return out.reshape(shp)


def layernorm_channels_first(x, weight, bias, eps=1e-6):
    """ConvNeXt-style channels-first LayerNorm. x: [B, C, *spatial], weight/bias: [C]."""
    B, C = x.shape[0], x.shape[1]
    spatial = x.shape[2:]
    S = math.prod(spatial) if spatial else 1
    x3 = x.reshape(B, C, S)

    itemsize = jnp.dtype(x.dtype).itemsize
    Cp = _round_up(C, 8)                            # sublane padding inside VMEM
    per_elem_bytes = 4 * itemsize + 16              # 2x in + 2x out dbuf + f32 temps

    if S >= 128:
        bt = 1
        ts_budget = max(128, (_TILE_BUDGET // (Cp * per_elem_bytes)) // 128 * 128)
        want_spatial_steps = max(1, _cdiv(_MIN_GRID_STEPS, B))
        ts_steps = _round_up(_cdiv(S, want_spatial_steps), 128)
        ts = min(ts_budget, ts_steps)
        if ts >= S:
            ts = S                                   # full spatial extent per block
        else:
            # Rebalance; ragged tail handled by Pallas masking (waste < 128 lanes/step).
            n_s = _cdiv(S, ts)
            ts = _round_up(_cdiv(S, n_s), 128)
    else:
        # Small spatial extent: full (lane-sparse) S per block; tile several batches
        # per step to amortize the per-grid-step overhead.
        # TODO(synk): for tiny S a (C, B*S)-style relayout would restore lane density,
        # at the cost of an extra HBM transpose pass.
        ts = S
        per_batch = Cp * _round_up(S, 128) * per_elem_bytes
        bt = max(1, min(B, _TILE_BUDGET // per_batch))
        bt = min(bt, max(1, _cdiv(B, _MIN_GRID_STEPS)))
        bt = _cdiv(B, _cdiv(B, bt))                  # rebalance

    out = pl.pallas_call(
        functools.partial(_ln_cfirst_kernel, eps=eps),
        out_shape=jax.ShapeDtypeStruct((B, C, S), x.dtype),
        grid=(_cdiv(B, bt), _cdiv(S, ts)),
        in_specs=[
            pl.BlockSpec((bt, C, ts), lambda b, j: (b, 0, j)),
            pl.BlockSpec((C, 1), lambda b, j: (0, 0)),
            pl.BlockSpec((C, 1), lambda b, j: (0, 0)),
        ],
        out_specs=pl.BlockSpec((bt, C, ts), lambda b, j: (b, 0, j)),
        compiler_params=pltpu.CompilerParams(
            dimension_semantics=("parallel", "parallel"),
            vmem_limit_bytes=_VMEM_LIMIT_BYTES,
        ),
    )(x3, weight.reshape(C, 1), bias.reshape(C, 1))
    return out.reshape(x.shape)


def layer_norm(x, weight, bias, eps=1e-6, data_format="channels_last"):
    """Forward pass of the reference LayerNorm module."""
    if data_format == "channels_last":
        return layernorm_channels_last(x, weight, bias, eps)
    elif data_format == "channels_first":
        return layernorm_channels_first(x, weight, bias, eps)
    raise NotImplementedError(data_format)


# ----------------------------------------------------------------------------
# Pure-JAX references (PyTorch semantics) for correctness checks
# ----------------------------------------------------------------------------
def _ref_channels_last(x, w, b, eps):
    u = jnp.mean(x, axis=-1, keepdims=True)
    s = jnp.mean((x - u) ** 2, axis=-1, keepdims=True)
    return (x - u) / jnp.sqrt(s + eps) * w + b


def _ref_channels_first(x, w, b, eps):
    u = jnp.mean(x, axis=1, keepdims=True)
    s = jnp.mean((x - u) ** 2, axis=1, keepdims=True)
    xn = (x - u) / jnp.sqrt(s + eps)
    shape = (1, -1) + (1,) * (x.ndim - 2)
    return w.reshape(shape) * xn + b.reshape(shape)


if __name__ == "__main__":
    key = jax.random.PRNGKey(0)
    k1, k2, k3, k4, k5, k6, k7, k8 = jax.random.split(key, 8)

    # channels_first: LN over the channel axis of a small NCHW feature map.
    C_cf = 4
    x_cf = jax.random.normal(k1, (2, C_cf, 16, 16), jnp.float32)
    w_cf = 1.0 + 0.1 * jax.random.normal(k2, (C_cf,), jnp.float32)
    b_cf = 0.1 * jax.random.normal(k3, (C_cf,), jnp.float32)

    # channels_last: LN over the trailing channel axis.
    C_cl = 32
    x_cl = jax.random.normal(k4, (2, 8, 16, C_cl), jnp.float32)
    w_cl = 1.0 + 0.1 * jax.random.normal(k5, (C_cl,), jnp.float32)
    b_cl = 0.1 * jax.random.normal(k6, (C_cl,), jnp.float32)

    # Ragged shapes exercise the masked partial last block (no pad/slice path).
    x_cl_ragged = jax.random.normal(k7, (3, 5, 7, C_cl), jnp.float32)
    x_cf_ragged = jax.random.normal(k8, (2, C_cf, 10, 13), jnp.float32)

    fwd_cf = jax.jit(functools.partial(layer_norm, data_format="channels_first"))
    fwd_cl = jax.jit(functools.partial(layer_norm, data_format="channels_last"))

    y_cf = jax.block_until_ready(fwd_cf(x_cf, w_cf, b_cf))
    y_cl = jax.block_until_ready(fwd_cl(x_cl, w_cl, b_cl))
    y_cl_r = jax.block_until_ready(fwd_cl(x_cl_ragged, w_cl, b_cl))
    y_cf_r = jax.block_until_ready(fwd_cf(x_cf_ragged, w_cf, b_cf))

    r_cf = _ref_channels_first(x_cf, w_cf, b_cf, 1e-6)
    r_cl = _ref_channels_last(x_cl, w_cl, b_cl, 1e-6)
    r_cl_r = _ref_channels_last(x_cl_ragged, w_cl, b_cl, 1e-6)
    r_cf_r = _ref_channels_first(x_cf_ragged, w_cf, b_cf, 1e-6)

    assert y_cf.shape == x_cf.shape and y_cl.shape == x_cl.shape
    assert bool(jnp.all(jnp.isfinite(y_cf))) and bool(jnp.all(jnp.isfinite(y_cl)))
    assert jnp.allclose(y_cf, r_cf, atol=1e-5, rtol=1e-5), float(jnp.max(jnp.abs(y_cf - r_cf)))
    assert jnp.allclose(y_cl, r_cl, atol=1e-5, rtol=1e-5), float(jnp.max(jnp.abs(y_cl - r_cl)))
    assert jnp.allclose(y_cl_r, r_cl_r, atol=1e-5, rtol=1e-5), float(jnp.max(jnp.abs(y_cl_r - r_cl_r)))
    assert jnp.allclose(y_cf_r, r_cf_r, atol=1e-5, rtol=1e-5), float(jnp.max(jnp.abs(y_cf_r - r_cf_r)))
    print("KERNEL_OK")
</pallas_src>

<mosaic_0001>
module attributes {stable_mosaic.version = 11 : i64} {
  func.func @_ln_cfirst_kernel(%arg0: i32, %arg1: i32, %arg2: memref<1x4x128xf32, #tpu.memory_space<vmem>>, %arg3: memref<4x1xf32, #tpu.memory_space<vmem>>, %arg4: memref<4x1xf32, #tpu.memory_space<vmem>>, %arg5: memref<1x4x128xf32, #tpu.memory_space<vmem>>) attributes {dimension_semantics = [#tpu.dimension_semantics<parallel>, #tpu.dimension_semantics<parallel>], iteration_bounds = array<i64: 2, 2>, scalar_prefetch = 0 : i64, scratch_operands = 0 : i64, tpu.core_type = #tpu.core_type<tc>, window_params = [{transform_indices = @transform_0, window_bounds = array<i64: 1, 4, 128>}, {pipeline_mode = #tpu.pipeline_mode<synchronous>, transform_indices = @transform_1, window_bounds = array<i64: 4, 1>}, {pipeline_mode = #tpu.pipeline_mode<synchronous>, transform_indices = @transform_2, window_bounds = array<i64: 4, 1>}, {transform_indices = @transform_3, window_bounds = array<i64: 1, 4, 128>}]} {
    %c0 = arith.constant 0 : index
    %c0_0 = arith.constant 0 : index
    %c0_1 = arith.constant 0 : index
    %0 = vector.load %arg2[%c0, %c0_0, %c0_1] : memref<1x4x128xf32, #tpu.memory_space<vmem>>, vector<1x4x128xf32>
    %cst = arith.constant dense<0.000000e+00> : vector<1x128xf32>
    %1 = vector.multi_reduction <add>, %0, %cst [1] : vector<1x4x128xf32> to vector<1x128xf32>
    %2 = vector.shape_cast %1 : vector<1x128xf32> to vector<1x1x128xf32>
    %cst_2 = arith.constant 4.000000e+00 : f32
    %3 = vector.broadcast %cst_2 : f32 to vector<1x1x128xf32>
    %4 = arith.divf %2, %3 : vector<1x1x128xf32>
    %5 = vector.broadcast %4 : vector<1x1x128xf32> to vector<1x4x128xf32>
    %6 = arith.subf %0, %5 : vector<1x4x128xf32>
    %7 = arith.mulf %6, %6 : vector<1x4x128xf32>
    %cst_3 = arith.constant dense<0.000000e+00> : vector<1x128xf32>
    %8 = vector.multi_reduction <add>, %7, %cst_3 [1] : vector<1x4x128xf32> to vector<1x128xf32>
    %9 = vector.shape_cast %8 : vector<1x128xf32> to vector<1x1x128xf32>
    %cst_4 = arith.constant 4.000000e+00 : f32
    %10 = vector.broadcast %cst_4 : f32 to vector<1x1x128xf32>
    %11 = arith.divf %9, %10 : vector<1x1x128xf32>
    %cst_5 = arith.constant 9.99999997E-7 : f32
    %12 = vector.broadcast %cst_5 : f32 to vector<1x1x128xf32>
    %13 = arith.addf %11, %12 : vector<1x1x128xf32>
    %14 = math.rsqrt %13 : vector<1x1x128xf32>
    %15 = vector.broadcast %14 : vector<1x1x128xf32> to vector<1x4x128xf32>
    %16 = arith.mulf %6, %15 : vector<1x4x128xf32>
    %c0_6 = arith.constant 0 : index
    %c0_7 = arith.constant 0 : index
    %17 = vector.load %arg3[%c0_6, %c0_7] : memref<4x1xf32, #tpu.memory_space<vmem>>, vector<4x1xf32>
    %18 = vector.shape_cast %17 : vector<4x1xf32> to vector<1x4x1xf32>
    %19 = vector.broadcast %18 : vector<1x4x1xf32> to vector<1x4x128xf32>
    %20 = arith.mulf %16, %19 : vector<1x4x128xf32>
    %c0_8 = arith.constant 0 : index
    %c0_9 = arith.constant 0 : index
    %21 = vector.load %arg4[%c0_8, %c0_9] : memref<4x1xf32, #tpu.memory_space<vmem>>, vector<4x1xf32>
    %22 = vector.shape_cast %21 : vector<4x1xf32> to vector<1x4x1xf32>
    %23 = vector.broadcast %22 : vector<1x4x1xf32> to vector<1x4x128xf32>
    %24 = arith.addf %20, %23 : vector<1x4x128xf32>
    %c0_10 = arith.constant 0 : index
    %c0_11 = arith.constant 0 : index
    %c0_12 = arith.constant 0 : index
    %25 = vector.load %arg5[%c0_10, %c0_11, %c0_12] : memref<1x4x128xf32, #tpu.memory_space<vmem>>, vector<1x4x128xf32>
    tpu.vector_store %arg5[%c0_10, %c0_11, %c0_12], %24 {strides = array<i32>} : memref<1x4x128xf32, #tpu.memory_space<vmem>>, vector<1x4x128xf32>,
    return
  }
  func.func @transform_0(%arg0: i32, %arg1: i32) -> (i32, i32, i32) {
    %c0_i32 = arith.constant 0 : i32
    %c0_i32_0 = arith.constant 0 : i32
    return %arg0, %c0_i32, %arg1 : i32, i32, i32
  }
  func.func @transform_1(%arg0: i32, %arg1: i32) -> (i32, i32) {
    %c0_i32 = arith.constant 0 : i32
    %c0_i32_0 = arith.constant 0 : i32
    %c0_i32_1 = arith.constant 0 : i32
    return %c0_i32, %c0_i32_0 : i32, i32
  }
  func.func @transform_2(%arg0: i32, %arg1: i32) -> (i32, i32) {
    %c0_i32 = arith.constant 0 : i32
    %c0_i32_0 = arith.constant 0 : i32
    %c0_i32_1 = arith.constant 0 : i32
    return %c0_i32, %c0_i32_0 : i32, i32
  }
  func.func @transform_3(%arg0: i32, %arg1: i32) -> (i32, i32, i32) {
    %c0_i32 = arith.constant 0 : i32
    %c0_i32_0 = arith.constant 0 : i32
    return %arg0, %c0_i32, %arg1 : i32, i32, i32
  }
}

</mosaic_0001>

<llo_original>
// kernel: layer_norm.1
$region0: #{layer_norm.1}
  #allocation0 [shape = 'u32[]', space=smem, size = 0x4, offset = 0x4, fixed_abs, tag = 'smem constant byte address 0x4 - core index']
  #allocation1 [shape = 'u32[144,128]{1,0:T(1,128)}', space=vmem, size = 0x12000, scoped, tag = 'internal scratch']
  %s0 = inlined_call_operand.vmem [shape: f32[2,4,256], index: 0, kind: input, shape index: {}]
  %s1 = inlined_call_operand.vmem [shape: f32[4,1], index: 1, kind: input, shape index: {}]
  %s2 = inlined_call_operand.vmem [shape: f32[4,1], index: 2, kind: input, shape index: {}]
  %s3 = inlined_call_operand.vmem [shape: f32[2,4,256], index: 3, kind: output, shape index: {}]
  %s4 = sld [smem:[#allocation0]]
  $region45: #{layer_norm.1} parent=0
    _
  %s6 = ssub.s32 1, %s4
  %s7 = scalar_select 0, %s6, %s4
  loop: start=0, step=1, limit=6
  $region2: #{layer_norm.1} parent=0 // loop_pre_header
    _
  $region3: #{layer_norm.1} parent=0 // loop_header
    %s9 = sphi 0, %s13
    %p10 = scmp.ge.s32.totalorder %s9, 6
    %s16 = sphi 0, %s28
    %s17 = sphi 0, %s24
    %s18 = sphi 0, %s16
    %s19 = sphi 0, %s17
    %s20 = sphi 0, %s18
    %s21 = sphi 0, %s19
    %s33 = sphi 0, %s35
    %s36 = sphi 0, %s33
    %s37 = sphi 0, %s36
    %s53 = sphi 0, %s37
    %s57 = sphi 0, %s57
    %s59 = sphi 0, %s57
    %s60 = sphi 0, %s59
    %s74 = sphi 0, %s60
    %s78 = sphi 0, %s78
    %s80 = sphi 0, %s78
    %s81 = sphi 0, %s80
    %s95 = sphi 0, %s81
    %s103 = sphi 0, %s105
    %s106 = sphi 0, %s103
    %s107 = sphi 0, %s106
    %s123 = sphi 0, %s107
  $region4: #{layer_norm.1} parent=0 // loop_header_branch
    %12 = sbr.rel (%p10) target = $region8
  $region5: #{layer_norm.1} parent=0 // loop_body
    %s14 = ssub.s32 %s9, 1
    %s15 = ssub.s32 %s9, 2
    %s22 = sadd.s32 1, %s17
    %p23 = scmp.ge.s32.totalorder %s22, 2
    %s24 = scalar_select %p23, 0, %s22
    %s25 = sadd.s32 1, %s16
    %s26 = scalar_select %p23, %s25, %s16
    %p27 = scmp.ge.s32.totalorder %s26, 2
    %s28 = scalar_select %p27, 0, %s26
    %s29 = ssub.s32 %s16, %s28
    %s30 = ssub.s32 %s17, %s24
    %s31 = sor.u32 %s29, %s30
    %p32 = scmp.eq.s32.totalorder %s31, 0
    %s34 = sadd.s32 %s33, 1
    %s35 = scalar_select %p32, %s33, %s34
    %p38 = pneg %p32
    %p39 = scmp.eq.s32.totalorder %s9, 3
    %p40 = por %p38, %p39
    %p41 = scmp.ne.s32.totalorder %s33, %s36
    %p42 = scmp.eq.s32.totalorder %s9, 0
    %p43 = por %p41, %p42
    %p44 = scmp.ne.s32.totalorder %s33, %s36
    %p45 = scmp.eq.s32.totalorder %s14, 3
    %p46 = por %p44, %p45
    %p47 = scmp.ne.s32.totalorder %s36, %s37
    %p48 = scmp.eq.s32.totalorder %s14, 0
    %p49 = por %p47, %p48
    %p50 = scmp.ne.s32.totalorder %s36, %s37
    %p51 = scmp.eq.s32.totalorder %s15, 3
    %p52 = por %p50, %p51
    %p54 = scmp.ne.s32.totalorder %s37, %s53
    %p55 = scmp.eq.s32.totalorder %s15, 0
    %p56 = por %p54, %p55
    %s58 = sadd.s32 %s57, 1
    %p61 = scmp.eq.s32.totalorder %s9, 3
    %p62 = scmp.ne.s32.totalorder %s57, %s59
    %p63 = scmp.eq.s32.totalorder %s9, 0
    %p64 = por %p62, %p63
    %p65 = scmp.ne.s32.totalorder %s57, %s59
    %p66 = scmp.eq.s32.totalorder %s14, 3
    %p67 = por %p65, %p66
    %p68 = scmp.ne.s32.totalorder %s59, %s60
    %p69 = scmp.eq.s32.totalorder %s14, 0
    %p70 = por %p68, %p69
    %p71 = scmp.ne.s32.totalorder %s59, %s60
    %p72 = scmp.eq.s32.totalorder %s15, 3
    %p73 = por %p71, %p72
    %p75 = scmp.ne.s32.totalorder %s60, %s74
    %p76 = scmp.eq.s32.totalorder %s15, 0
    %p77 = por %p75, %p76
    %s79 = sadd.s32 %s78, 1
    %p82 = scmp.eq.s32.totalorder %s9, 3
    %p83 = scmp.ne.s32.totalorder %s78, %s80
    %p84 = scmp.eq.s32.totalorder %s9, 0
    %p85 = por %p83, %p84
    %p86 = scmp.ne.s32.totalorder %s78, %s80
    %p87 = scmp.eq.s32.totalorder %s14, 3
    %p88 = por %p86, %p87
    %p89 = scmp.ne.s32.totalorder %s80, %s81
    %p90 = scmp.eq.s32.totalorder %s14, 0
    %p91 = por %p89, %p90
    %p92 = scmp.ne.s32.totalorder %s80, %s81
    %p93 = scmp.eq.s32.totalorder %s15, 3
    %p94 = por %p92, %p93
    %p96 = scmp.ne.s32.totalorder %s81, %s95
    %p97 = scmp.eq.s32.totalorder %s15, 0
    %p98 = por %p96, %p97
    %s99 = ssub.s32 %s16, %s28
    %s100 = ssub.s32 %s17, %s24
    %s101 = sor.u32 %s99, %s100
    %p102 = scmp.eq.s32.totalorder %s101, 0
    %s104 = sadd.s32 %s103, 1
    %s105 = scalar_select %p102, %s103, %s104
    %p108 = pneg %p102
    %p109 = scmp.eq.s32.totalorder %s9, 3
    %p110 = por %p108, %p109
    %p111 = scmp.ne.s32.totalorder %s103, %s106
    %p112 = scmp.eq.s32.totalorder %s9, 0
    %p113 = por %p111, %p112
    %p114 = scmp.ne.s32.totalorder %s103, %s106
    %p115 = scmp.eq.s32.totalorder %s14, 3
    %p116 = por %p114, %p115
    %p117 = scmp.ne.s32.totalorder %s106, %s107
    %p118 = scmp.eq.s32.totalorder %s14, 0
    %p119 = por %p117, %p118
    %p120 = scmp.ne.s32.totalorder %s106, %s107
    %p121 = scmp.eq.s32.totalorder %s15, 3
    %p122 = por %p120, %p121
    %p124 = scmp.ne.s32.totalorder %s107, %s123
    %p125 = scmp.eq.s32.totalorder %s15, 0
    %p126 = por %p124, %p125
    %p127 = scmp.le.s32.totalorder 1, %s9
    %p128 = scmp.lt.s32.totalorder %s9, 5
    %p129 = pnand %p127, %p128
    %p130 = pneg %p129
    // Predicated region
    $region9: #{layer_norm.1} parent=5 // pred_check
      _
    $region10: #{layer_norm.1} parent=5 // pred_check_branch
      %132 = sbr.rel (%p129) target = $region12
    $region11: #{layer_norm.1} parent=5 // pred_region
      %s133 = ssub.s32 %s9, 1
      // Predicated region
      $region13: #{layer_norm.1} parent=11 // pred_check
        %p134 = pneg %p70
      $region14: #{layer_norm.1} parent=11 // pred_check_branch
        %136 = sbr.rel (%p134) target = $region16
      $region15: #{layer_norm.1} parent=11 // pred_region
        _
      $region16: #{layer_norm.1} parent=11 // pred_fallthru
        _
      // Predicated region
      $region17: #{layer_norm.1} parent=11 // pred_check
        %p137 = pneg %p91
      $region18: #{layer_norm.1} parent=11 // pred_check_branch
        %139 = sbr.rel (%p137) target = $region20
      $region19: #{layer_norm.1} parent=11 // pred_region
        _
      $region20: #{layer_norm.1} parent=11 // pred_fallthru
        _
    $region12: #{layer_norm.1} parent=5 // pred_fallthru
      _
    %p140 = scmp.lt.s32.totalorder %s9, 4
    // Predicated region
    $region21: #{layer_norm.1} parent=5 // pred_check
      %p141 = pneg %p140
    $region22: #{layer_norm.1} parent=5 // pred_check_branch
      %143 = sbr.rel (%p141) target = $region24
    $region23: #{layer_norm.1} parent=5 // pred_region
      // Predicated region
      $region25: #{layer_norm.1} parent=23 // pred_check
        %p144 = pneg %p43
      $region26: #{layer_norm.1} parent=23 // pred_check_branch
        %146 = sbr.rel (%p144) target = $region28
      $region27: #{layer_norm.1} parent=23 // pred_region
        %p147 = scmp.lt.s32.totalorder %s16, 1
        %s148 = scalar_select %p147, %s16, 1
        %p149 = scmp.lt.s32.totalorder %s17, 1
        %s150 = scalar_select %p149, %s17, 1
        %s151 = smul.addr %s148, 2
        %s152 = sadd.s32 %s150, %s151
        %s153 = smul.addr %s152, 4
        %s154 = scalar_lea.vmem %s0, %s153
      $region28: #{layer_norm.1} parent=23 // pred_fallthru
        _
    $region24: #{layer_norm.1} parent=5 // pred_fallthru
      _
    %p155 = scmp.le.s32.totalorder 1, %s9
    %p156 = scmp.lt.s32.totalorder %s9, 5
    %p157 = pnand %p155, %p156
    %p158 = pneg %p157
    // Predicated region
    $region29: #{layer_norm.1} parent=5 // pred_check
      _
    $region30: #{layer_norm.1} parent=5 // pred_check_branch
      %160 = sbr.rel (%p157) target = $region32
    $region31: #{layer_norm.1} parent=5 // pred_region
      %s161 = ssub.s32 %s9, 1
      %p162 = scmp.lt.s32.totalorder %s18, 1
      %s163 = scalar_select %p162, %s18, 1
      %p164 = scmp.lt.s32.totalorder %s19, 1
      %s165 = scalar_select %p164, %s19, 1
      %s166 = smul.addr %s163, 2
      %s167 = sadd.s32 %s165, %s166
      %s168 = smul.addr %s167, 4
      %s169 = scalar_lea.vmem %s0, %s168
      %p170 = pneg %p49
      %p171 = pneg %p46
      %p172 = pneg %p70
      %p173 = pneg %p67
      %p174 = pneg %p91
      %p175 = pneg %p88
      %p176 = pneg %p119
      %p177 = pneg %p116
      %p178 = scmp.lt.s32.totalorder %s18, 1
      %s179 = scalar_select %p178, %s18, 1
      %p180 = scmp.lt.s32.totalorder %s19, 1
      %s181 = scalar_select %p180, %s19, 1
      %s182 = smul.addr %s179, 2
      %s183 = sadd.s32 %s181, %s182
      %s184 = smul.addr %s183, 4
      %s185 = scalar_lea.vmem %s3, %s184
      %p186 = scmp.lt.s32.totalorder %s18, 1
      %s187 = scalar_select %p186, %s18, 1
      %p188 = scmp.lt.s32.totalorder %s19, 1
      %s189 = scalar_select %p188, %s19, 1
      %s190 = smul.addr %s187, 2
      %s191 = sadd.s32 %s189, %s190
      %s192 = smul.addr %s191, 4
      %s193 = scalar_lea.vmem %s0, %s192
      %p194 = scmp.lt.s32.totalorder %s18, 1
      %s195 = scalar_select %p194, %s18, 1
      %p196 = scmp.lt.s32.totalorder %s19, 1
      %s197 = scalar_select %p196, %s19, 1
      %s198 = smul.addr %s195, 2
      %s199 = sadd.s32 %s197, %s198
      %s200 = smul.addr %s199, 4
      %s201 = scalar_lea.vmem %s3, %s200
      %v202 = vld [vmem:[%s193] sm:$0xf]
      %vm203 = vcmask 1043456
      %v204 = vsel %vm203, %v202, 0.0
      %v205 = vrot.slane %v204, 4
      %v206 = vadd.f32 %v204, %v205
      %v207 = vrot.slane %v206, 2
      %v208 = vadd.f32 %v206, %v207
      %v209 = vrot.slane %v208, 1
      %v210 = vadd.f32 %v208, %v209
      %v211 = vrcp.pop 4.0
      %v212 = vmul.f32 %v210, %v211
      %v213 = vsub.f32 %v202, %v212
      %v214 = vmul.f32 %v213, %v213
      %v215 = vsel %vm203, %v214, 0.0
      %v216 = vrot.slane %v215, 4
      %v217 = vadd.f32 %v215, %v216
      %v218 = vrot.slane %v217, 2
      %v219 = vadd.f32 %v217, %v218
      %v220 = vrot.slane %v219, 1
      %v221 = vadd.f32 %v219, %v220
      %v222 = vmul.f32 %v221, %v211
      %v223 = vadd.f32 %v222, 1e-06
      %v224 = vrsqrt.pop %v223
      %v225 = vmul.f32 %v213, %v224
      %v226 = vld [vmem:[%s1] sm:$0xf]
      %228 = vset.pattern.permute.xlu0 0
      %229 = vperm.xlu0 %228, %v226
      %v230 = vpop.permute.xlu0 %229
      %v232 = vmul.f32 %v225, %v230
      %v233 = vld [vmem:[%s2] sm:$0xf]
      %235 = vset.pattern.permute.xlu0 0
      %236 = vperm.xlu0 %235, %v233
      %v237 = vpop.permute.xlu0 %236
      %v239 = vadd.f32 %v232, %v237
      %240 = vst [vmem:[%s201] sm:$0xf] %v239
      %p241 = scmp.lt.s32.totalorder %s18, 1
      %s242 = scalar_select %p241, %s18, 1
      %p243 = scmp.lt.s32.totalorder %s19, 1
      %s244 = scalar_select %p243, %s19, 1
      %s245 = smul.addr %s242, 2
      %s246 = sadd.s32 %s244, %s245
      %s247 = smul.addr %s246, 4
      %s248 = scalar_lea.vmem %s3, %s247
      // Predicated region
      $region33: #{layer_norm.1} parent=31 // pred_check
        %p249 = pneg %p116
      $region34: #{layer_norm.1} parent=31 // pred_check_branch
        %251 = sbr.rel (%p249) target = $region36
      $region35: #{layer_norm.1} parent=31 // pred_region
        _
      $region36: #{layer_norm.1} parent=31 // pred_fallthru
        _
    $region32: #{layer_norm.1} parent=5 // pred_fallthru
      _
    %p252 = scmp.le.s32.totalorder 2, %s9
    // Predicated region
    $region37: #{layer_norm.1} parent=5 // pred_check
      %p253 = pneg %p252
    $region38: #{layer_norm.1} parent=5 // pred_check_branch
      %255 = sbr.rel (%p253) target = $region40
    $region39: #{layer_norm.1} parent=5 // pred_region
      %s256 = ssub.s32 %s9, 2
      // Predicated region
      $region41: #{layer_norm.1} parent=39 // pred_check
        %p257 = pneg %p122
      $region42: #{layer_norm.1} parent=39 // pred_check_branch
        %259 = sbr.rel (%p257) target = $region44
      $region43: #{layer_norm.1} parent=39 // pred_region
        %p260 = scmp.lt.s32.totalorder %s20, 1
        %s261 = scalar_select %p260, %s20, 1
        %p262 = scmp.lt.s32.totalorder %s21, 1
        %s263 = scalar_select %p262, %s21, 1
        %s264 = smul.addr %s261, 2
        %s265 = sadd.s32 %s263, %s264
        %s266 = smul.addr %s265, 4
        %s267 = scalar_lea.vmem %s3, %s266
      $region44: #{layer_norm.1} parent=39 // pred_fallthru
        _
    $region40: #{layer_norm.1} parent=5 // pred_fallthru
      _
  $region6: #{layer_norm.1} parent=0 // loop_footer
    %s13 = sadd.s32 1, %s9
  $region7: #{layer_norm.1} parent=0 // loop_footer_branch
    %8 = sbr.rel target = $region3
  $region8: #{layer_norm.1} parent=0 // loop_exit
    _

</llo_original>
